<compile_context>
chip_gen: v6e
topology: v6e:2x2x1
jax: 0.10.0
libtpu: 0.0.40
codegen_flags: <defaults>
</compile_context>

<pallas_src>
import functools

import jax
import jax.numpy as jnp
from jax.experimental import pallas as pl
from jax.experimental.pallas import tpu as pltpu


def _vmem_capacity_bytes():
    """Physical VMEM per TensorCore; falls back to the smallest generation (v7x)."""
    try:
        return int(pltpu.get_tpu_info().vmem_capacity_bytes)
    except Exception:
        return 64 << 20


def _pick_bb(batch, per_block_bytes, target_bytes, max_bb=32):
    """Largest divisor of `batch` (<= max_bb) whose x-block stays under target_bytes.

    Mild preference for keeping >= 4 grid steps (pipeline depth, esp. with v7x
    megacore halving the per-core step count) as long as blocks stay >= 512 KiB.
    """
    divs = [d for d in range(1, min(batch, max_bb) + 1)
            if batch % d == 0 and d * per_block_bytes <= target_bytes]
    if not divs:
        return 1
    bb = divs[-1]
    for d in reversed(divs):
        if batch // d >= 4 and d * per_block_bytes >= (512 << 10):
            bb = d
            break
    return bb


def _channel_gate_kernel(x_ref, w1t_ref, b1_ref, w2t_ref, b2_ref, o_ref, *, bb, inv_hw):
    # x_ref / o_ref: (BB, C, HW) tile; weights/biases are small resident tiles.
    w1t = w1t_ref[...]                     # (Cr, C)  f32
    b1 = b1_ref[...]                       # (Cr, 1)  f32
    w2t = w2t_ref[...]                     # (C, Cr)  f32
    b2 = b2_ref[...]                       # (C, 1)   f32

    # --- pooling: per batch element, one (C, 1) avg column and one max column ---
    avg_cols = []
    max_cols = []
    for b in range(bb):                    # bb is a trace-time constant -> unrolled
        xb = x_ref[b]                      # (C, HW) in the I/O dtype
        # Sum accumulates in f32 (only a per-batch slice is upcast, transiently).
        s = jnp.sum(xb.astype(jnp.float32), axis=-1, keepdims=True)   # (C, 1)
        avg_cols.append(s * inv_hw)
        # Max is an order statistic: reduce in the native dtype, upcast the result.
        max_cols.append(jnp.max(xb, axis=-1, keepdims=True).astype(jnp.float32))

    # Column-oriented fused MLP over all 2*BB pooled vectors in one matmul pair:
    # columns [0, BB) are the avg pools, [BB, 2*BB) the max pools.
    pooled = jnp.concatenate(avg_cols + max_cols, axis=-1)             # (C, 2*BB)

    h = jnp.dot(w1t, pooled, preferred_element_type=jnp.float32) + b1  # (Cr, 2*BB)
    h = jnp.maximum(h, 0.0)                                            # ReLU (silu=False)
    att = jnp.dot(w2t, h, preferred_element_type=jnp.float32) + b2     # (C, 2*BB)

    scale = jax.nn.sigmoid(att[:, :bb] + att[:, bb:])                  # (C, BB) f32

    # --- scale & store: elementwise stays in the I/O dtype (no full-tile upcast) -
    for b in range(bb):
        sb = scale[:, b:b + 1].astype(x_ref.dtype)                     # (C, 1)
        o_ref[b] = (x_ref[b] * sb).astype(o_ref.dtype)


def channel_gate(x_nchw, w1, b1, w2, b2):
    """ChannelGate forward.

    x_nchw: (B, C, H, W), any float dtype (dtype preserved through HBM I/O).
    Weights follow the `v @ W` convention of the reference:
      w1: (C, Cr), b1: (Cr,), w2: (Cr, C), b2: (C,).
    """
    B, C, H, W = x_nchw.shape
    Cr = w1.shape[1]
    HW = H * W

    # Free reshape (merges trailing dims); no padding of the spatial axis: the
    # BlockSpec trailing dims equal the full array dims, so Mosaic handles the
    # ragged lane tail in-kernel (masked reduce / masked tail store).
    x3 = x_nchw.reshape(B, C, HW)

    itemsize = jnp.dtype(x3.dtype).itemsize
    per_block = C * HW * itemsize

    vmem_cap = (_vmem_capacity_bytes() * 3) // 4       # ~48 MiB v7x, ~96 MiB v5e/v6e
    target_block = max(1 << 20, min(8 << 20, vmem_cap // 10))
    bb = _pick_bb(B, per_block, target_block)

    block_bytes = bb * per_block
    weight_bytes = 4 * (Cr * C + Cr + C * Cr + C)
    # 2x double-buffered input + 2x double-buffered output + weights + the largest
    # in-kernel f32 temporary (one (C, HW) slice) + headroom, clamped to the cap.
    needed = 4 * block_bytes + 2 * weight_bytes + C * HW * 4 + (2 << 20)
    vmem_budget = int(max(min(needed, vmem_cap), 8 << 20))
    # TODO(synk): for very large single-batch C*HW blocks that no longer fit
    # double-buffered in the v7x budget, add an HW-tiled two-pass fallback
    # (running sum/max in VMEM scratch over an 'arbitrary' HW grid axis, then a
    # second scaling pass).

    # Column-orientation parameters (== nn.Linear's native (out, in) layout).
    w1t = w1.T.astype(jnp.float32)               # (Cr, C)
    w2t = w2.T.astype(jnp.float32)               # (C, Cr)
    b1c = b1.reshape(Cr, 1).astype(jnp.float32)  # (Cr, 1)
    b2c = b2.reshape(C, 1).astype(jnp.float32)   # (C, 1)

    cost = pl.CostEstimate(
        flops=int(B * (3 * C * HW + 8 * C * Cr)),
        transcendentals=int(B * C),
        bytes_accessed=int(2 * B * C * HW * itemsize),
    )

    kernel = functools.partial(_channel_gate_kernel, bb=bb, inv_hw=1.0 / HW)

    out3 = pl.pallas_call(
        kernel,
        out_shape=jax.ShapeDtypeStruct((B, C, HW), x3.dtype),
        grid=(B // bb,),
        in_specs=[
            pl.BlockSpec((bb, C, HW), lambda i: (i, 0, 0)),
            pl.BlockSpec((Cr, C), lambda i: (0, 0)),
            pl.BlockSpec((Cr, 1), lambda i: (0, 0)),
            pl.BlockSpec((C, Cr), lambda i: (0, 0)),
            pl.BlockSpec((C, 1), lambda i: (0, 0)),
        ],
        out_specs=pl.BlockSpec((bb, C, HW), lambda i: (i, 0, 0)),
        compiler_params=pltpu.CompilerParams(
            dimension_semantics=("parallel",),
            vmem_limit_bytes=vmem_budget,
        ),
        cost_estimate=cost,
        # NOTE: pass input_output_aliases={0: 0} at call sites where x is dead
        # after the gate to drop the extra B*C*HW HBM output allocation.
    )(x3, w1t, b1c, w2t, b2c)

    return out3.reshape(B, C, H, W)


def channel_gate_ref(x_nchw, w1, b1, w2, b2):
    avg = jnp.mean(x_nchw.astype(jnp.float32), axis=(2, 3))
    mx = jnp.max(x_nchw.astype(jnp.float32), axis=(2, 3))

    def mlp(v):
        return jnp.maximum(v @ w1 + b1, 0.0) @ w2 + b2

    scale = jax.nn.sigmoid(mlp(avg) + mlp(mx))
    return x_nchw.astype(jnp.float32) * scale[:, :, None, None]


if __name__ == "__main__":
    # Shapes consistent with the module: gate_channels=64, reduction_ratio=16.
    B, C = 2, 64
    reduction_ratio = 16
    Cr = C // reduction_ratio

    key = jax.random.PRNGKey(0)
    kx, k1, kb1, k2, kb2, kx2 = jax.random.split(key, 6)

    w1 = jax.random.normal(k1, (C, Cr), dtype=jnp.float32) * (1.0 / jnp.sqrt(C))
    b1 = jax.random.normal(kb1, (Cr,), dtype=jnp.float32) * 0.01
    w2 = jax.random.normal(k2, (Cr, C), dtype=jnp.float32) * (1.0 / jnp.sqrt(Cr))
    b2 = jax.random.normal(kb2, (C,), dtype=jnp.float32) * 0.01

    # Case 1: f32, H*W a multiple of 128 (16x16 = 256).
    x = jax.random.normal(kx, (B, C, 16, 16), dtype=jnp.float32)
    out = jax.block_until_ready(channel_gate(x, w1, b1, w2, b2))
    ref = channel_gate_ref(x, w1, b1, w2, b2)
    assert out.shape == x.shape
    assert jnp.allclose(out, ref, atol=1e-5, rtol=1e-5), "f32 16x16 mismatch"

    # Case 2: f32, ragged spatial (14x14 = 196, handled fully in-kernel — no pad).
    x2 = jax.random.normal(kx2, (B, C, 14, 14), dtype=jnp.float32)
    out2 = jax.block_until_ready(channel_gate(x2, w1, b1, w2, b2))
    ref2 = channel_gate_ref(x2, w1, b1, w2, b2)
    assert out2.shape == x2.shape
    assert jnp.allclose(out2, ref2, atol=1e-5, rtol=1e-5), "f32 14x14 (ragged) mismatch"

    # Case 3: bf16 HBM I/O (half the HBM traffic), bf16-resident elementwise path.
    xb = x.astype(jnp.bfloat16)
    outb = jax.block_until_ready(channel_gate(xb, w1, b1, w2, b2))
    refb = channel_gate_ref(xb, w1, b1, w2, b2)
    assert outb.dtype == jnp.bfloat16
    assert jnp.allclose(outb.astype(jnp.float32), refb, atol=5e-2, rtol=5e-2), "bf16 mismatch"

    print("KERNEL_OK")
</pallas_src>

<mosaic_0001>
module attributes {stable_mosaic.version = 11 : i64} {
  func.func @_channel_gate_kernel(%arg0: i32, %arg1: memref<2x64x256xf32, #tpu.memory_space<vmem>>, %arg2: memref<4x64xf32, #tpu.memory_space<vmem>>, %arg3: memref<4x1xf32, #tpu.memory_space<vmem>>, %arg4: memref<64x4xf32, #tpu.memory_space<vmem>>, %arg5: memref<64x1xf32, #tpu.memory_space<vmem>>, %arg6: memref<2x64x256xf32, #tpu.memory_space<vmem>>) attributes {dimension_semantics = [#tpu.dimension_semantics<parallel>], iteration_bounds = array<i64: 1>, scalar_prefetch = 0 : i64, scratch_operands = 0 : i64, tpu.core_type = #tpu.core_type<tc>, window_params = [{transform_indices = @transform_0, window_bounds = array<i64: 2, 64, 256>}, {pipeline_mode = #tpu.pipeline_mode<synchronous>, transform_indices = @transform_1, window_bounds = array<i64: 4, 64>}, {pipeline_mode = #tpu.pipeline_mode<synchronous>, transform_indices = @transform_2, window_bounds = array<i64: 4, 1>}, {pipeline_mode = #tpu.pipeline_mode<synchronous>, transform_indices = @transform_3, window_bounds = array<i64: 64, 4>}, {pipeline_mode = #tpu.pipeline_mode<synchronous>, transform_indices = @transform_4, window_bounds = array<i64: 64, 1>}, {transform_indices = @transform_5, window_bounds = array<i64: 2, 64, 256>}]} {
    %c0 = arith.constant 0 : index
    %c0_0 = arith.constant 0 : index
    %0 = vector.load %arg2[%c0, %c0_0] : memref<4x64xf32, #tpu.memory_space<vmem>>, vector<4x64xf32>
    %c0_1 = arith.constant 0 : index
    %c0_2 = arith.constant 0 : index
    %1 = vector.load %arg3[%c0_1, %c0_2] : memref<4x1xf32, #tpu.memory_space<vmem>>, vector<4x1xf32>
    %c0_3 = arith.constant 0 : index
    %c0_4 = arith.constant 0 : index
    %2 = vector.load %arg4[%c0_3, %c0_4] : memref<64x4xf32, #tpu.memory_space<vmem>>, vector<64x4xf32>
    %c0_5 = arith.constant 0 : index
    %c0_6 = arith.constant 0 : index
    %3 = vector.load %arg5[%c0_5, %c0_6] : memref<64x1xf32, #tpu.memory_space<vmem>>, vector<64x1xf32>
    %c0_7 = arith.constant 0 : index
    %c0_8 = arith.constant 0 : index
    %c0_9 = arith.constant 0 : index
    %4 = vector.load %arg1[%c0_7, %c0_8, %c0_9] : memref<2x64x256xf32, #tpu.memory_space<vmem>>, vector<1x64x256xf32>
    %5 = vector.shape_cast %4 : vector<1x64x256xf32> to vector<64x256xf32>
    %cst = arith.constant dense<0.000000e+00> : vector<64xf32>
    %6 = vector.multi_reduction <add>, %5, %cst [1] : vector<64x256xf32> to vector<64xf32>
    %7 = vector.shape_cast %6 : vector<64xf32> to vector<64x1xf32>
    %cst_10 = arith.constant 3.906250e-03 : f32
    %8 = vector.broadcast %cst_10 : f32 to vector<64x1xf32>
    %9 = arith.mulf %7, %8 : vector<64x1xf32>
    %cst_11 = arith.constant dense<0xFF800000> : vector<64xf32>
    %10 = vector.multi_reduction <maximumf>, %5, %cst_11 [1] : vector<64x256xf32> to vector<64xf32>
    %11 = vector.shape_cast %10 : vector<64xf32> to vector<64x1xf32>
    %c1 = arith.constant 1 : index
    %c0_12 = arith.constant 0 : index
    %c0_13 = arith.constant 0 : index
    %12 = vector.load %arg1[%c1, %c0_12, %c0_13] : memref<2x64x256xf32, #tpu.memory_space<vmem>>, vector<1x64x256xf32>
    %13 = vector.shape_cast %12 : vector<1x64x256xf32> to vector<64x256xf32>
    %cst_14 = arith.constant dense<0.000000e+00> : vector<64xf32>
    %14 = vector.multi_reduction <add>, %13, %cst_14 [1] : vector<64x256xf32> to vector<64xf32>
    %15 = vector.shape_cast %14 : vector<64xf32> to vector<64x1xf32>
    %cst_15 = arith.constant 3.906250e-03 : f32
    %16 = vector.broadcast %cst_15 : f32 to vector<64x1xf32>
    %17 = arith.mulf %15, %16 : vector<64x1xf32>
    %cst_16 = arith.constant dense<0xFF800000> : vector<64xf32>
    %18 = vector.multi_reduction <maximumf>, %13, %cst_16 [1] : vector<64x256xf32> to vector<64xf32>
    %19 = vector.shape_cast %18 : vector<64xf32> to vector<64x1xf32>
    %20 = tpu.concatenate %9, %17, %11, %19 in 1 : vector<64x1xf32>, vector<64x1xf32>, vector<64x1xf32>, vector<64x1xf32> -> vector<64x4xf32>
    %cst_17 = arith.constant dense<0.000000e+00> : vector<4x4xf32>
    %21 = tpu.matmul %0, %20, %cst_17 {dimension_numbers = #tpu.dot_dimension_numbers<[1], [0], [0], [1], [0, 0, 1, 1], [], []>} : vector<4x64xf32>, vector<64x4xf32>, vector<4x4xf32> -> vector<4x4xf32>
    %22 = vector.broadcast %1 : vector<4x1xf32> to vector<4x4xf32>
    %23 = arith.addf %21, %22 : vector<4x4xf32>
    %cst_18 = arith.constant 0.000000e+00 : f32
    %24 = vector.broadcast %cst_18 : f32 to vector<4x4xf32>
    %25 = arith.maximumf %23, %24 : vector<4x4xf32>
    %cst_19 = arith.constant dense<0.000000e+00> : vector<64x4xf32>
    %26 = tpu.matmul %2, %25, %cst_19 {dimension_numbers = #tpu.dot_dimension_numbers<[1], [0], [0], [1], [0, 0, 1, 1], [], []>} : vector<64x4xf32>, vector<4x4xf32>, vector<64x4xf32> -> vector<64x4xf32>
    %27 = vector.broadcast %3 : vector<64x1xf32> to vector<64x4xf32>
    %28 = arith.addf %26, %27 : vector<64x4xf32>
    %29 = vector.extract_strided_slice %28 {offsets = [0, 0], sizes = [64, 2], strides = [1, 1]} : vector<64x4xf32> to vector<64x2xf32>
    %30 = vector.extract_strided_slice %28 {offsets = [0, 2], sizes = [64, 2], strides = [1, 1]} : vector<64x4xf32> to vector<64x2xf32>
    %31 = arith.addf %29, %30 : vector<64x2xf32>
    %32 = arith.negf %31 : vector<64x2xf32>
    %33 = math.exp %32 : vector<64x2xf32>
    %cst_20 = arith.constant 1.000000e+00 : f32
    %34 = vector.broadcast %cst_20 : f32 to vector<64x2xf32>
    %35 = arith.addf %34, %33 : vector<64x2xf32>
    %36 = arith.divf %34, %35 : vector<64x2xf32>
    %37 = vector.extract_strided_slice %36 {offsets = [0, 0], sizes = [64, 1], strides = [1, 1]} : vector<64x2xf32> to vector<64x1xf32>
    %c0_21 = arith.constant 0 : index
    %c0_22 = arith.constant 0 : index
    %c0_23 = arith.constant 0 : index
    %38 = vector.load %arg1[%c0_21, %c0_22, %c0_23] : memref<2x64x256xf32, #tpu.memory_space<vmem>>, vector<1x64x256xf32>
    %39 = vector.shape_cast %38 : vector<1x64x256xf32> to vector<64x256xf32>
    %40 = vector.broadcast %37 : vector<64x1xf32> to vector<64x256xf32>
    %41 = arith.mulf %39, %40 : vector<64x256xf32>
    %c0_24 = arith.constant 0 : index
    %c0_25 = arith.constant 0 : index
    %c0_26 = arith.constant 0 : index
    %42 = vector.load %arg6[%c0_24, %c0_25, %c0_26] : memref<2x64x256xf32, #tpu.memory_space<vmem>>, vector<1x64x256xf32>
    %43 = vector.shape_cast %42 : vector<1x64x256xf32> to vector<64x256xf32>
    %44 = vector.shape_cast %41 : vector<64x256xf32> to vector<1x64x256xf32>
    tpu.vector_store %arg6[%c0_24, %c0_25, %c0_26], %44 {strides = array<i32>} : memref<2x64x256xf32, #tpu.memory_space<vmem>>, vector<1x64x256xf32>,
    %45 = vector.extract_strided_slice %36 {offsets = [0, 1], sizes = [64, 1], strides = [1, 1]} : vector<64x2xf32> to vector<64x1xf32>
    %c1_27 = arith.constant 1 : index
    %c0_28 = arith.constant 0 : index
    %c0_29 = arith.constant 0 : index
    %46 = vector.load %arg1[%c1_27, %c0_28, %c0_29] : memref<2x64x256xf32, #tpu.memory_space<vmem>>, vector<1x64x256xf32>
    %47 = vector.shape_cast %46 : vector<1x64x256xf32> to vector<64x256xf32>
    %48 = vector.broadcast %45 : vector<64x1xf32> to vector<64x256xf32>
    %49 = arith.mulf %47, %48 : vector<64x256xf32>
    %c1_30 = arith.constant 1 : index
    %c0_31 = arith.constant 0 : index
    %c0_32 = arith.constant 0 : index
    %50 = vector.load %arg6[%c1_30, %c0_31, %c0_32] : memref<2x64x256xf32, #tpu.memory_space<vmem>>, vector<1x64x256xf32>
    %51 = vector.shape_cast %50 : vector<1x64x256xf32> to vector<64x256xf32>
    %52 = vector.shape_cast %49 : vector<64x256xf32> to vector<1x64x256xf32>
    tpu.vector_store %arg6[%c1_30, %c0_31, %c0_32], %52 {strides = array<i32>} : memref<2x64x256xf32, #tpu.memory_space<vmem>>, vector<1x64x256xf32>,
    return
  }
  func.func @transform_0(%arg0: i32) -> (i32, i32, i32) {
    %c0_i32 = arith.constant 0 : i32
    %c0_i32_0 = arith.constant 0 : i32
    %c0_i32_1 = arith.constant 0 : i32
    return %arg0, %c0_i32, %c0_i32_0 : i32, i32, i32
  }
  func.func @transform_1(%arg0: i32) -> (i32, i32) {
    %c0_i32 = arith.constant 0 : i32
    %c0_i32_0 = arith.constant 0 : i32
    %c0_i32_1 = arith.constant 0 : i32
    return %c0_i32, %c0_i32_0 : i32, i32
  }
  func.func @transform_2(%arg0: i32) -> (i32, i32) {
    %c0_i32 = arith.constant 0 : i32
    %c0_i32_0 = arith.constant 0 : i32
    %c0_i32_1 = arith.constant 0 : i32
    return %c0_i32, %c0_i32_0 : i32, i32
  }
  func.func @transform_3(%arg0: i32) -> (i32, i32) {
    %c0_i32 = arith.constant 0 : i32
    %c0_i32_0 = arith.constant 0 : i32
    %c0_i32_1 = arith.constant 0 : i32
    return %c0_i32, %c0_i32_0 : i32, i32
  }
  func.func @transform_4(%arg0: i32) -> (i32, i32) {
    %c0_i32 = arith.constant 0 : i32
    %c0_i32_0 = arith.constant 0 : i32
    %c0_i32_1 = arith.constant 0 : i32
    return %c0_i32, %c0_i32_0 : i32, i32
  }
  func.func @transform_5(%arg0: i32) -> (i32, i32, i32) {
    %c0_i32 = arith.constant 0 : i32
    %c0_i32_0 = arith.constant 0 : i32
    %c0_i32_1 = arith.constant 0 : i32
    return %arg0, %c0_i32, %c0_i32_0 : i32, i32, i32
  }
}

</mosaic_0001>

<llo_original>
// kernel: tpu_custom_call.1
$region0: #{tpu_custom_call.1}
  #allocation0 [shape = 'u32[]', space=smem, size = 0x4, offset = 0x4, fixed_abs, tag = 'smem constant byte address 0x4 - core index']
  #allocation1 [shape = 'u32[144,128]{1,0:T(1,128)}', space=vmem, size = 0x12000, scoped, tag = 'internal scratch']
  %s0 = inlined_call_operand.hbm [shape: f32[2,64,256], index: 0, kind: input, shape index: {}]
  %s1 = inlined_call_operand.vmem [shape: f32[4,64], index: 1, kind: input, shape index: {}]
  %s2 = inlined_call_operand.vmem [shape: f32[4,1], index: 2, kind: input, shape index: {}]
  %s3 = inlined_call_operand.vmem [shape: f32[64,4], index: 3, kind: input, shape index: {}]
  %s4 = inlined_call_operand.vmem [shape: f32[64,1], index: 4, kind: input, shape index: {}]
  %s5 = inlined_call_operand.hbm [shape: f32[2,64,256], index: 5, kind: output, shape index: {}]
  %s6 = sld [smem:[#allocation0]]
  $region34: #{tpu_custom_call.1} parent=0
    _
  %s8 = ssub.s32 1, %s6
  %s9 = scalar_select 0, %s8, %s6
  $region1: #{tpu_custom_call.1} parent=0
    #allocation2 [shape = 'u8[131072]{0}', space=vmem, size = 0x20000, scoped, tag = 'input window, operand 0, single buffered']
    #allocation3 [shape = 's32[1]{0}', space=sflag, size = 0x4, scoped, tag = 'scoped memory for tpu_custom_call.1']
    #allocation4 [shape = 's32[1]{0}', space=sflag, size = 0x4, scoped, tag = 'scoped memory for tpu_custom_call.1']
    #allocation5 [shape = 'u8[131072]{0}', space=vmem, size = 0x20000, scoped, tag = 'output window, operand 0, single buffered']
    %10 = vsyncpa [#allocation3], 0
    %11 = vsyncpa [#allocation4], 0
    // Predicated region
    $region2: #{tpu_custom_call.1} parent=1 // pred_check
      _
    $region3: #{tpu_custom_call.1} parent=1 // pred_check_branch
      %13 = sbr.rel (0) target = $region5
    $region4: #{tpu_custom_call.1} parent=1 // pred_region
      %s15 = ssub.s32 4096, 4096
      %16 = vsyncadd [#allocation3], %s15
      %s17 = sshll.u32 [#allocation2], 4
      %s18 = int_to_ptr.vmem [resolvable:$true] %s17
      %23 = dma.hbm_to_vmem [thread:$0]  %s0, 4096, %s18, [#allocation3], 256, 256, 16
    $region5: #{tpu_custom_call.1} parent=1 // pred_fallthru
      _
    // Predicated region
    $region6: #{tpu_custom_call.1} parent=1 // pred_check
      _
    $region7: #{tpu_custom_call.1} parent=1 // pred_check_branch
      %25 = sbr.rel (0) target = $region9
    $region8: #{tpu_custom_call.1} parent=1 // pred_region
      _
    $region9: #{tpu_custom_call.1} parent=1 // pred_fallthru
      _
    // Predicated region
    $region10: #{tpu_custom_call.1} parent=1 // pred_check
      _
    $region11: #{tpu_custom_call.1} parent=1 // pred_check_branch
      %27 = sbr.rel (0) target = $region13
    $region12: #{tpu_custom_call.1} parent=1 // pred_region
      _
    $region13: #{tpu_custom_call.1} parent=1 // pred_fallthru
      _
    // Predicated region
    $region14: #{tpu_custom_call.1} parent=1 // pred_check
      _
    $region15: #{tpu_custom_call.1} parent=1 // pred_check_branch
      %29 = sbr.rel (0) target = $region17
    $region16: #{tpu_custom_call.1} parent=1 // pred_region
      _
    $region17: #{tpu_custom_call.1} parent=1 // pred_fallthru
      _
    // Predicated region
    $region18: #{tpu_custom_call.1} parent=1 // pred_check
      _
    $region19: #{tpu_custom_call.1} parent=1 // pred_check_branch
      %31 = sbr.rel (0) target = $region21
    $region20: #{tpu_custom_call.1} parent=1 // pred_region
      _
    $region21: #{tpu_custom_call.1} parent=1 // pred_fallthru
      _
    // Predicated region
    $region22: #{tpu_custom_call.1} parent=1 // pred_check
      _
    $region23: #{tpu_custom_call.1} parent=1 // pred_check_branch
      %33 = sbr.rel (0) target = $region25
    $region24: #{tpu_custom_call.1} parent=1 // pred_region
      %34 = dma.done [#allocation3], 4096
    $region25: #{tpu_custom_call.1} parent=1 // pred_fallthru
      _
    %v35 = vld [vmem:[%s1] sm:$0xf]
    %v36 = vld [vmem:[%s2] sm:$0xf]
    %v37 = vld [vmem:[%s3] sm:$0xff]
    %v38 = vld [vmem:[%s3 + $0x8] sm:$0xff]
    %v39 = vld [vmem:[%s3 + $0x10] sm:$0xff]
    %v40 = vld [vmem:[%s3 + $0x18] sm:$0xff]
    %v41 = vld [vmem:[%s3 + $0x20] sm:$0xff]
    %v42 = vld [vmem:[%s3 + $0x28] sm:$0xff]
    %v43 = vld [vmem:[%s3 + $0x30] sm:$0xff]
    %v44 = vld [vmem:[%s3 + $0x38] sm:$0xff]
    %v45 = vld [vmem:[%s4] sm:$0xff]
    %v46 = vld [vmem:[%s4 + $0x8] sm:$0xff]
    %v47 = vld [vmem:[%s4 + $0x10] sm:$0xff]
    %v48 = vld [vmem:[%s4 + $0x18] sm:$0xff]
    %v49 = vld [vmem:[%s4 + $0x20] sm:$0xff]
    %v50 = vld [vmem:[%s4 + $0x28] sm:$0xff]
    %v51 = vld [vmem:[%s4 + $0x30] sm:$0xff]
    %v52 = vld [vmem:[%s4 + $0x38] sm:$0xff]
    %v53 = vld [vmem:[#allocation2] sm:$0xff]
    %v54 = vld [vmem:[#allocation2 + $0x8] sm:$0xff]
    %v55 = vld [vmem:[#allocation2 + $0x10] sm:$0xff]
    %v56 = vld [vmem:[#allocation2 + $0x18] sm:$0xff]
    %v57 = vld [vmem:[#allocation2 + $0x20] sm:$0xff]
    %v58 = vld [vmem:[#allocation2 + $0x28] sm:$0xff]
    %v59 = vld [vmem:[#allocation2 + $0x30] sm:$0xff]
    %v60 = vld [vmem:[#allocation2 + $0x38] sm:$0xff]
    %v61 = vld [vmem:[#allocation2 + $0x40] sm:$0xff]
    %v62 = vld [vmem:[#allocation2 + $0x48] sm:$0xff]
    %v63 = vld [vmem:[#allocation2 + $0x50] sm:$0xff]
    %v64 = vld [vmem:[#allocation2 + $0x58] sm:$0xff]
    %v65 = vld [vmem:[#allocation2 + $0x60] sm:$0xff]
    %v66 = vld [vmem:[#allocation2 + $0x68] sm:$0xff]
    %v67 = vld [vmem:[#allocation2 + $0x70] sm:$0xff]
    %v68 = vld [vmem:[#allocation2 + $0x78] sm:$0xff]
    %v69 = vadd.f32 %v53, %v54
    %70 = vadd.xlane.f32.xlu0 %v69
    %v71 = vpop.xlane.xlu0 %70
    %v72 = vadd.f32 %v55, %v56
    %73 = vadd.xlane.f32.xlu0 %v72
    %v74 = vpop.xlane.xlu0 %73
    %v75 = vadd.f32 %v57, %v58
    %76 = vadd.xlane.f32.xlu0 %v75
    %v77 = vpop.xlane.xlu0 %76
    %v78 = vadd.f32 %v59, %v60
    %79 = vadd.xlane.f32.xlu0 %v78
    %v80 = vpop.xlane.xlu0 %79
    %v81 = vadd.f32 %v61, %v62
    %82 = vadd.xlane.f32.xlu0 %v81
    %v83 = vpop.xlane.xlu0 %82
    %v84 = vadd.f32 %v63, %v64
    %85 = vadd.xlane.f32.xlu0 %v84
    %v86 = vpop.xlane.xlu0 %85
    %v87 = vadd.f32 %v65, %v66
    %88 = vadd.xlane.f32.xlu0 %v87
    %v89 = vpop.xlane.xlu0 %88
    %v90 = vadd.f32 %v67, %v68
    %91 = vadd.xlane.f32.xlu0 %v90
    %v92 = vpop.xlane.xlu0 %91
    %v93 = vmul.f32 %v71, 0.00390625
    %v94 = vmul.f32 %v74, 0.00390625
    %v95 = vmul.f32 %v77, 0.00390625
    %v96 = vmul.f32 %v80, 0.00390625
    %v97 = vmul.f32 %v83, 0.00390625
    %v98 = vmul.f32 %v86, 0.00390625
    %v99 = vmul.f32 %v89, 0.00390625
    %v100 = vmul.f32 %v92, 0.00390625
    %v101 = vmax.f32 %v53, %v54
    %102 = vmax.xlane.f32.xlu0 %v101
    %v103 = vpop.xlane.xlu0 %102
    %v104 = vmax.f32 %v55, %v56
    %105 = vmax.xlane.f32.xlu0 %v104
    %v106 = vpop.xlane.xlu0 %105
    %v107 = vmax.f32 %v57, %v58
    %108 = vmax.xlane.f32.xlu0 %v107
    %v109 = vpop.xlane.xlu0 %108
    %v110 = vmax.f32 %v59, %v60
    %111 = vmax.xlane.f32.xlu0 %v110
    %v112 = vpop.xlane.xlu0 %111
    %v113 = vmax.f32 %v61, %v62
    %114 = vmax.xlane.f32.xlu0 %v113
    %v115 = vpop.xlane.xlu0 %114
    %v116 = vmax.f32 %v63, %v64
    %117 = vmax.xlane.f32.xlu0 %v116
    %v118 = vpop.xlane.xlu0 %117
    %v119 = vmax.f32 %v65, %v66
    %120 = vmax.xlane.f32.xlu0 %v119
    %v121 = vpop.xlane.xlu0 %120
    %v122 = vmax.f32 %v67, %v68
    %123 = vmax.xlane.f32.xlu0 %v122
    %v124 = vpop.xlane.xlu0 %123
    %s125 = scalar_lea.vmem [#allocation2], 128
    %v126 = vld [vmem:[%s125] sm:$0xff]
    %v127 = vld [vmem:[%s125 + $0x8] sm:$0xff]
    %v128 = vld [vmem:[%s125 + $0x10] sm:$0xff]
    %v129 = vld [vmem:[%s125 + $0x18] sm:$0xff]
    %v130 = vld [vmem:[%s125 + $0x20] sm:$0xff]
    %v131 = vld [vmem:[%s125 + $0x28] sm:$0xff]
    %v132 = vld [vmem:[%s125 + $0x30] sm:$0xff]
    %v133 = vld [vmem:[%s125 + $0x38] sm:$0xff]
    %v134 = vld [vmem:[%s125 + $0x40] sm:$0xff]
    %v135 = vld [vmem:[%s125 + $0x48] sm:$0xff]
    %v136 = vld [vmem:[%s125 + $0x50] sm:$0xff]
    %v137 = vld [vmem:[%s125 + $0x58] sm:$0xff]
    %v138 = vld [vmem:[%s125 + $0x60] sm:$0xff]
    %v139 = vld [vmem:[%s125 + $0x68] sm:$0xff]
    %v140 = vld [vmem:[%s125 + $0x70] sm:$0xff]
    %v141 = vld [vmem:[%s125 + $0x78] sm:$0xff]
    %v142 = vadd.f32 %v126, %v127
    %143 = vadd.xlane.f32.xlu0 %v142
    %v144 = vpop.xlane.xlu0 %143
    %v145 = vadd.f32 %v128, %v129
    %146 = vadd.xlane.f32.xlu0 %v145
    %v147 = vpop.xlane.xlu0 %146
    %v148 = vadd.f32 %v130, %v131
    %149 = vadd.xlane.f32.xlu0 %v148
    %v150 = vpop.xlane.xlu0 %149
    %v151 = vadd.f32 %v132, %v133
    %152 = vadd.xlane.f32.xlu0 %v151
    %v153 = vpop.xlane.xlu0 %152
    %v154 = vadd.f32 %v134, %v135
    %155 = vadd.xlane.f32.xlu0 %v154
    %v156 = vpop.xlane.xlu0 %155
    %v157 = vadd.f32 %v136, %v137
    %158 = vadd.xlane.f32.xlu0 %v157
    %v159 = vpop.xlane.xlu0 %158
    %v160 = vadd.f32 %v138, %v139
    %161 = vadd.xlane.f32.xlu0 %v160
    %v162 = vpop.xlane.xlu0 %161
    %v163 = vadd.f32 %v140, %v141
    %164 = vadd.xlane.f32.xlu0 %v163
    %v165 = vpop.xlane.xlu0 %164
    %v166 = vmul.f32 %v144, 0.00390625
    %v167 = vmul.f32 %v147, 0.00390625
    %v168 = vmul.f32 %v150, 0.00390625
    %v169 = vmul.f32 %v153, 0.00390625
    %v170 = vmul.f32 %v156, 0.00390625
    %v171 = vmul.f32 %v159, 0.00390625
    %v172 = vmul.f32 %v162, 0.00390625
    %v173 = vmul.f32 %v165, 0.00390625
    %v174 = vmax.f32 %v126, %v127
    %175 = vmax.xlane.f32.xlu0 %v174
    %v176 = vpop.xlane.xlu0 %175
    %v177 = vmax.f32 %v128, %v129
    %178 = vmax.xlane.f32.xlu0 %v177
    %v179 = vpop.xlane.xlu0 %178
    %v180 = vmax.f32 %v130, %v131
    %181 = vmax.xlane.f32.xlu0 %v180
    %v182 = vpop.xlane.xlu0 %181
    %v183 = vmax.f32 %v132, %v133
    %184 = vmax.xlane.f32.xlu0 %v183
    %v185 = vpop.xlane.xlu0 %184
    %v186 = vmax.f32 %v134, %v135
    %187 = vmax.xlane.f32.xlu0 %v186
    %v188 = vpop.xlane.xlu0 %187
    %v189 = vmax.f32 %v136, %v137
    %190 = vmax.xlane.f32.xlu0 %v189
    %v191 = vpop.xlane.xlu0 %190
    %v192 = vmax.f32 %v138, %v139
    %193 = vmax.xlane.f32.xlu0 %v192
    %v194 = vpop.xlane.xlu0 %193
    %v195 = vmax.f32 %v140, %v141
    %196 = vmax.xlane.f32.xlu0 %v195
    %v197 = vpop.xlane.xlu0 %196
    %vm198 = vcmask 7168
    %v199 = vsel %vm198, %v93, %v166
    %v200 = vsel %vm198, %v94, %v167
    %v201 = vsel %vm198, %v95, %v168
    %v202 = vsel %vm198, %v96, %v169
    %v203 = vsel %vm198, %v97, %v170
    %v204 = vsel %vm198, %v98, %v171
    %v205 = vsel %vm198, %v99, %v172
    %v206 = vsel %vm198, %v100, %v173
    %vm207 = vcmask 15360
    %v208 = vsel %vm207, %v199, %v103
    %v209 = vsel %vm207, %v200, %v106
    %v210 = vsel %vm207, %v201, %v109
    %v211 = vsel %vm207, %v202, %v112
    %v212 = vsel %vm207, %v203, %v115
    %v213 = vsel %vm207, %v204, %v118
    %v214 = vsel %vm207, %v205, %v121
    %v215 = vsel %vm207, %v206, %v124
    %vm216 = vcmask 23552
    %v217 = vsel %vm216, %v208, %v176
    %v218 = vsel %vm216, %v209, %v179
    %v219 = vsel %vm216, %v210, %v182
    %v220 = vsel %vm216, %v211, %v185
    %v221 = vsel %vm216, %v212, %v188
    %v222 = vsel %vm216, %v213, %v191
    %v223 = vsel %vm216, %v214, %v194
    %v224 = vsel %vm216, %v215, %v197
    %226 = vset.pattern.permute.xlu0 0
    %227 = vperm.xlu0 %226, %v36
    %v228 = vpop.permute.xlu0 %227
    %vm230 = vcmask 523264
    %v232 = vsel %vm230, %v35, 0
    %234 = vmatprep.subr.mxu0 0.0
    %235 = vmatpush1.msra.mxu0 0.0
    %236 = vmatprep.subr.mxu0 0.0
    %237 = vmatpush1.msra.mxu0 0.0
    %238 = vmatprep.subr.mxu0 0.0
    %239 = vmatpush1.msra.mxu0 0.0
    %240 = vmatprep.subr.mxu0 0.0
    %241 = vmatpush1.msra.mxu0 0.0
    %242 = vmatprep.subr.mxu0 0.0
    %243 = vmatpush1.msra.mxu0 0.0
    %244 = vmatprep.subr.mxu0 0.0
    %245 = vmatpush1.msra.mxu0 0.0
    %246 = vmatprep.subr.mxu0 0.0
    %247 = vmatpush1.msra.mxu0 0.0
    %248 = vmatprep.subr.mxu0 0.0
    %249 = vmatpush1.msra.mxu0 0.0
    %250 = vmatprep.subr.mxu0 0.0
    %251 = vmatpush1.msra.mxu0 %v224
    %252 = vmatprep.subr.mxu0 0.0
    %253 = vmatpush1.msra.mxu0 %v223
    %254 = vmatprep.subr.mxu0 0.0
    %255 = vmatpush1.msra.mxu0 %v222
    %256 = vmatprep.subr.mxu0 0.0
    %257 = vmatpush1.msra.mxu0 %v221
    %258 = vmatprep.subr.mxu0 0.0
    %259 = vmatpush1.msra.mxu0 %v220
    %260 = vmatprep.subr.mxu0 0.0
    %261 = vmatpush1.msra.mxu0 %v219
    %262 = vmatprep.subr.mxu0 0.0
    %263 = vmatpush1.msra.mxu0 %v218
    %264 = vmatprep.subr.mxu0 0.0
    %265 = vmatpush1.msra.mxu0 %v217
    %266 = vmatprep.subr.mxu0 0.0
    %267 = vmatpush2.msra.mxu0 0.0
    %268 = vmatprep.subr.mxu0 0.0
    %269 = vmatpush2.msra.mxu0 0.0
    %270 = vmatprep.subr.mxu0 0.0
    %271 = vmatpush2.msra.mxu0 0.0
    %272 = vmatprep.subr.mxu0 0.0
    %273 = vmatpush2.msra.mxu0 0.0
    %274 = vmatprep.subr.mxu0 0.0
    %275 = vmatpush2.msra.mxu0 0.0
    %276 = vmatprep.subr.mxu0 0.0
    %277 = vmatpush2.msra.mxu0 0.0
    %278 = vmatprep.subr.mxu0 0.0
    %279 = vmatpush2.msra.mxu0 0.0
    %280 = vmatprep.subr.mxu0 0.0
    %281 = vmatpush2.msra.mxu0 0.0
    %282 = vmatprep.subr.mxu0 0.0
    %283 = vmatpush2.msra.mxu0 0.0
    %284 = vmatprep.subr.mxu0 0.0
    %285 = vmatpush2.msra.mxu0 0.0
    %286 = vmatprep.subr.mxu0 0.0
    %287 = vmatpush2.msra.mxu0 0.0
    %288 = vmatprep.subr.mxu0 0.0
    %289 = vmatpush2.msra.mxu0 0.0
    %290 = vmatprep.subr.mxu0 0.0
    %291 = vmatpush2.msra.mxu0 0.0
    %292 = vmatprep.subr.mxu0 0.0
    %293 = vmatpush2.msra.mxu0 0.0
    %294 = vmatprep.subr.mxu0 0.0
    %295 = vmatpush2.msra.mxu0 0.0
    %296 = vmatprep.subr.mxu0 0.0
    %297 = vmatpush2.msra.mxu0 0.0
    %298 = vmatprep.mubr.f32.mxu0 0.0
    %299 = vmatmul.mubr.f32.gmra.mxu0 %v232
    %v300 = vpop.f32.mrf.mxu0
    %v301 = vadd.f32 %v228, %v300
    %v302 = vpop.f32.mrf.mxu0
    %303 = vdwg.mxu0
    %v304 = vmax.f32 %v301, 0.0
    %306 = vset.pattern.permute.xlu0 0
    %307 = vperm.xlu0 %306, %v45
    %v308 = vpop.permute.xlu0 %307
    %311 = vset.pattern.permute.xlu0 0
    %312 = vperm.xlu0 %311, %v46
    %v313 = vpop.permute.xlu0 %312
    %316 = vset.pattern.permute.xlu0 0
    %317 = vperm.xlu0 %316, %v47
    %v318 = vpop.permute.xlu0 %317
    %321 = vset.pattern.permute.xlu0 0
    %322 = vperm.xlu0 %321, %v48
    %v323 = vpop.permute.xlu0 %322
    %326 = vset.pattern.permute.xlu0 0
    %327 = vperm.xlu0 %326, %v49
    %v328 = vpop.permute.xlu0 %327
    %331 = vset.pattern.permute.xlu0 0
    %332 = vperm.xlu0 %331, %v50
    %v333 = vpop.permute.xlu0 %332
    %336 = vset.pattern.permute.xlu0 0
    %337 = vperm.xlu0 %336, %v51
    %v338 = vpop.permute.xlu0 %337
    %341 = vset.pattern.permute.xlu0 0
    %342 = vperm.xlu0 %341, %v52
    %v343 = vpop.permute.xlu0 %342
    %vm345 = vcmask 31744
    %v347 = vsel %vm345, %v37, 0
    %v350 = vsel %vm345, %v38, 0
    %v353 = vsel %vm345, %v39, 0
    %v356 = vsel %vm345, %v40, 0
    %v359 = vsel %vm345, %v41, 0
    %v362 = vsel %vm345, %v42, 0
    %v365 = vsel %vm345, %v43, 0
    %v368 = vsel %vm345, %v44, 0
    %vm370 = vcmask 1043456
    %v372 = vsel %vm370, %v304, 0
    %374 = vmatprep.subr.mxu0 0.0
    %375 = vmatpush1.msra.mxu0 0.0
    %376 = vmatprep.subr.mxu0 0.0
    %377 = vmatpush1.msra.mxu0 0.0
    %378 = vmatprep.subr.mxu0 0.0
    %379 = vmatpush1.msra.mxu0 0.0
    %380 = vmatprep.subr.mxu0 0.0
    %381 = vmatpush1.msra.mxu0 0.0
    %382 = vmatprep.subr.mxu0 0.0
    %383 = vmatpush1.msra.mxu0 0.0
    %384 = vmatprep.subr.mxu0 0.0
    %385 = vmatpush1.msra.mxu0 0.0
    %386 = vmatprep.subr.mxu0 0.0
    %387 = vmatpush1.msra.mxu0 0.0
    %388 = vmatprep.subr.mxu0 0.0
    %389 = vmatpush1.msra.mxu0 0.0
    %390 = vmatprep.subr.mxu0 0.0
    %391 = vmatpush1.msra.mxu0 0.0
    %392 = vmatprep.subr.mxu0 0.0
    %393 = vmatpush1.msra.mxu0 0.0
    %394 = vmatprep.subr.mxu0 0.0
    %395 = vmatpush1.msra.mxu0 0.0
    %396 = vmatprep.subr.mxu0 0.0
    %397 = vmatpush1.msra.mxu0 0.0
    %398 = vmatprep.subr.mxu0 0.0
    %399 = vmatpush1.msra.mxu0 0.0
    %400 = vmatprep.subr.mxu0 0.0
    %401 = vmatpush1.msra.mxu0 0.0
    %402 = vmatprep.subr.mxu0 0.0
    %403 = vmatpush1.msra.mxu0 0.0
    %404 = vmatprep.subr.mxu0 0.0
    %405 = vmatpush1.msra.mxu0 %v372
    %406 = vmatprep.subr.mxu0 0.0
    %407 = vmatpush2.msra.mxu0 0.0
    %408 = vmatprep.subr.mxu0 0.0
    %409 = vmatpush2.msra.mxu0 0.0
    %410 = vmatprep.subr.mxu0 0.0
    %411 = vmatpush2.msra.mxu0 0.0
    %412 = vmatprep.subr.mxu0 0.0
    %413 = vmatpush2.msra.mxu0 0.0
    %414 = vmatprep.subr.mxu0 0.0
    %415 = vmatpush2.msra.mxu0 0.0
    %416 = vmatprep.subr.mxu0 0.0
    %417 = vmatpush2.msra.mxu0 0.0
    %418 = vmatprep.subr.mxu0 0.0
    %419 = vmatpush2.msra.mxu0 0.0
    %420 = vmatprep.subr.mxu0 0.0
    %421 = vmatpush2.msra.mxu0 0.0
    %422 = vmatprep.subr.mxu0 0.0
    %423 = vmatpush2.msra.mxu0 0.0
    %424 = vmatprep.subr.mxu0 0.0
    %425 = vmatpush2.msra.mxu0 0.0
    %426 = vmatprep.subr.mxu0 0.0
    %427 = vmatpush2.msra.mxu0 0.0
    %428 = vmatprep.subr.mxu0 0.0
    %429 = vmatpush2.msra.mxu0 0.0
    %430 = vmatprep.subr.mxu0 0.0
    %431 = vmatpush2.msra.mxu0 0.0
    %432 = vmatprep.subr.mxu0 0.0
    %433 = vmatpush2.msra.mxu0 0.0
    %434 = vmatprep.subr.mxu0 0.0
    %435 = vmatpush2.msra.mxu0 0.0
    %436 = vmatprep.subr.mxu0 0.0
    %437 = vmatpush2.msra.mxu0 0.0
    %438 = vmatprep.mubr.f32.mxu0 0.0
    %439 = vmatmul.mubr.f32.gmra.mxu0 %v347
    %v440 = vpop.f32.mrf.mxu0
    %v441 = vadd.f32 %v308, %v440
    %v442 = vpop.f32.mrf.mxu0
    %443 = vmatprep.mubr.f32.mxu0 0.0
    %444 = vmatmul.mubr.f32.gmra.mxu0 %v350
    %v445 = vpop.f32.mrf.mxu0
    %v446 = vadd.f32 %v313, %v445
    %v447 = vpop.f32.mrf.mxu0
    %448 = vmatprep.mubr.f32.mxu0 0.0
    %449 = vmatmul.mubr.f32.gmra.mxu0 %v353
    %v450 = vpop.f32.mrf.mxu0
    %v451 = vadd.f32 %v318, %v450
    %v452 = vpop.f32.mrf.mxu0
    %453 = vmatprep.mubr.f32.mxu0 0.0
    %454 = vmatmul.mubr.f32.gmra.mxu0 %v356
    %v455 = vpop.f32.mrf.mxu0
    %v456 = vadd.f32 %v323, %v455
    %v457 = vpop.f32.mrf.mxu0
    %458 = vmatprep.mubr.f32.mxu0 0.0
    %459 = vmatmul.mubr.f32.gmra.mxu0 %v359
    %v460 = vpop.f32.mrf.mxu0
    %v461 = vadd.f32 %v328, %v460
    %v462 = vpop.f32.mrf.mxu0
    %463 = vmatprep.mubr.f32.mxu0 0.0
    %464 = vmatmul.mubr.f32.gmra.mxu0 %v362
    %v465 = vpop.f32.mrf.mxu0
    %v466 = vadd.f32 %v333, %v465
    %v467 = vpop.f32.mrf.mxu0
    %468 = vmatprep.mubr.f32.mxu0 0.0
    %469 = vmatmul.mubr.f32.gmra.mxu0 %v365
    %v470 = vpop.f32.mrf.mxu0
    %v471 = vadd.f32 %v338, %v470
    %v472 = vpop.f32.mrf.mxu0
    %473 = vmatprep.mubr.f32.mxu0 0.0
    %474 = vmatmul.mubr.f32.gmra.mxu0 %v368
    %v475 = vpop.f32.mrf.mxu0
    %v476 = vadd.f32 %v343, %v475
    %v477 = vpop.f32.mrf.mxu0
    %478 = vdwg.mxu0
    %487 = vrot.lane.b32.xlu0 %v441, 126
    %v488 = vpop.permute.xlu0 %487
    %489 = vrot.lane.b32.xlu0 %v446, 126
    %v490 = vpop.permute.xlu0 %489
    %491 = vrot.lane.b32.xlu0 %v451, 126
    %v492 = vpop.permute.xlu0 %491
    %493 = vrot.lane.b32.xlu0 %v456, 126
    %v494 = vpop.permute.xlu0 %493
    %495 = vrot.lane.b32.xlu0 %v461, 126
    %v496 = vpop.permute.xlu0 %495
    %497 = vrot.lane.b32.xlu0 %v466, 126
    %v498 = vpop.permute.xlu0 %497
    %499 = vrot.lane.b32.xlu0 %v471, 126
    %v500 = vpop.permute.xlu0 %499
    %501 = vrot.lane.b32.xlu0 %v476, 126
    %v502 = vpop.permute.xlu0 %501
    %v511 = vadd.f32 %v441, %v488
    %v512 = vadd.f32 %v446, %v490
    %v513 = vadd.f32 %v451, %v492
    %v514 = vadd.f32 %v456, %v494
    %v515 = vadd.f32 %v461, %v496
    %v516 = vadd.f32 %v466, %v498
    %v517 = vadd.f32 %v471, %v500
    %v518 = vadd.f32 %v476, %v502
    %v519 = vxor.u32 %v511, 2147483648
    %v520 = vxor.u32 %v512, 2147483648
    %v521 = vxor.u32 %v513, 2147483648
    %v522 = vxor.u32 %v514, 2147483648
    %v523 = vxor.u32 %v515, 2147483648
    %v524 = vxor.u32 %v516, 2147483648
    %v525 = vxor.u32 %v517, 2147483648
    %v526 = vxor.u32 %v518, 2147483648
    %v527 = vmul.f32 %v519, 1.442695
    %v528 = vpow.pop %v527
    %v529 = vmul.f32 %v520, 1.442695
    %v530 = vpow.pop %v529
    %v531 = vmul.f32 %v521, 1.442695
    %v532 = vpow.pop %v531
    %v533 = vmul.f32 %v522, 1.442695
    %v534 = vpow.pop %v533
    %v535 = vmul.f32 %v523, 1.442695
    %v536 = vpow.pop %v535
    %v537 = vmul.f32 %v524, 1.442695
    %v538 = vpow.pop %v537
    %v539 = vmul.f32 %v525, 1.442695
    %v540 = vpow.pop %v539
    %v541 = vmul.f32 %v526, 1.442695
    %v542 = vpow.pop %v541
    %v543 = vadd.f32 %v528, 1.0
    %v544 = vadd.f32 %v530, 1.0
    %v545 = vadd.f32 %v532, 1.0
    %v546 = vadd.f32 %v534, 1.0
    %v547 = vadd.f32 %v536, 1.0
    %v548 = vadd.f32 %v538, 1.0
    %v549 = vadd.f32 %v540, 1.0
    %v550 = vadd.f32 %v542, 1.0
    %v551 = vrcp.pop %v543
    %v552 = vmul.f32 1.0, %v551
    %v553 = vrcp.pop %v544
    %v554 = vmul.f32 1.0, %v553
    %v555 = vrcp.pop %v545
    %v556 = vmul.f32 1.0, %v555
    %v557 = vrcp.pop %v546
    %v558 = vmul.f32 1.0, %v557
    %v559 = vrcp.pop %v547
    %v560 = vmul.f32 1.0, %v559
    %v561 = vrcp.pop %v548
    %v562 = vmul.f32 1.0, %v561
    %v563 = vrcp.pop %v549
    %v564 = vmul.f32 1.0, %v563
    %v565 = vrcp.pop %v550
    %v566 = vmul.f32 1.0, %v565
    %568 = vset.pattern.permute.xlu0 0
    %569 = vperm.xlu0 %568, %v552
    %v570 = vpop.permute.xlu0 %569
    %573 = vset.pattern.permute.xlu0 0
    %574 = vperm.xlu0 %573, %v554
    %v575 = vpop.permute.xlu0 %574
    %578 = vset.pattern.permute.xlu0 0
    %579 = vperm.xlu0 %578, %v556
    %v580 = vpop.permute.xlu0 %579
    %583 = vset.pattern.permute.xlu0 0
    %584 = vperm.xlu0 %583, %v558
    %v585 = vpop.permute.xlu0 %584
    %588 = vset.pattern.permute.xlu0 0
    %589 = vperm.xlu0 %588, %v560
    %v590 = vpop.permute.xlu0 %589
    %593 = vset.pattern.permute.xlu0 0
    %594 = vperm.xlu0 %593, %v562
    %v595 = vpop.permute.xlu0 %594
    %598 = vset.pattern.permute.xlu0 0
    %599 = vperm.xlu0 %598, %v564
    %v600 = vpop.permute.xlu0 %599
    %603 = vset.pattern.permute.xlu0 0
    %604 = vperm.xlu0 %603, %v566
    %v605 = vpop.permute.xlu0 %604
    %v607 = vmul.f32 %v53, %v570
    %v608 = vmul.f32 %v54, %v570
    %v609 = vmul.f32 %v55, %v575
    %v610 = vmul.f32 %v56, %v575
    %v611 = vmul.f32 %v57, %v580
    %v612 = vmul.f32 %v58, %v580
    %v613 = vmul.f32 %v59, %v585
    %v614 = vmul.f32 %v60, %v585
    %v615 = vmul.f32 %v61, %v590
    %v616 = vmul.f32 %v62, %v590
    %v617 = vmul.f32 %v63, %v595
    %v618 = vmul.f32 %v64, %v595
    %v619 = vmul.f32 %v65, %v600
    %v620 = vmul.f32 %v66, %v600
    %v621 = vmul.f32 %v67, %v605
    %v622 = vmul.f32 %v68, %v605
    %623 = vst [vmem:[#allocation5] sm:$0xff] %v607
    %624 = vst [vmem:[#allocation5 + $0x8] sm:$0xff] %v608
    %625 = vst [vmem:[#allocation5 + $0x10] sm:$0xff] %v609
    %626 = vst [vmem:[#allocation5 + $0x18] sm:$0xff] %v610
    %627 = vst [vmem:[#allocation5 + $0x20] sm:$0xff] %v611
    %628 = vst [vmem:[#allocation5 + $0x28] sm:$0xff] %v612
    %629 = vst [vmem:[#allocation5 + $0x30] sm:$0xff] %v613
    %630 = vst [vmem:[#allocation5 + $0x38] sm:$0xff] %v614
    %631 = vst [vmem:[#allocation5 + $0x40] sm:$0xff] %v615
    %632 = vst [vmem:[#allocation5 + $0x48] sm:$0xff] %v616
    %633 = vst [vmem:[#allocation5 + $0x50] sm:$0xff] %v617
    %634 = vst [vmem:[#allocation5 + $0x58] sm:$0xff] %v618
    %635 = vst [vmem:[#allocation5 + $0x60] sm:$0xff] %v619
    %636 = vst [vmem:[#allocation5 + $0x68] sm:$0xff] %v620
    %637 = vst [vmem:[#allocation5 + $0x70] sm:$0xff] %v621
    %638 = vst [vmem:[#allocation5 + $0x78] sm:$0xff] %v622
    %v639 = vld [vmem:[%s125] sm:$0xff]
    %v640 = vld [vmem:[%s125 + $0x8] sm:$0xff]
    %v641 = vld [vmem:[%s125 + $0x10] sm:$0xff]
    %v642 = vld [vmem:[%s125 + $0x18] sm:$0xff]
    %v643 = vld [vmem:[%s125 + $0x20] sm:$0xff]
    %v644 = vld [vmem:[%s125 + $0x28] sm:$0xff]
    %v645 = vld [vmem:[%s125 + $0x30] sm:$0xff]
    %v646 = vld [vmem:[%s125 + $0x38] sm:$0xff]
    %v647 = vld [vmem:[%s125 + $0x40] sm:$0xff]
    %v648 = vld [vmem:[%s125 + $0x48] sm:$0xff]
    %v649 = vld [vmem:[%s125 + $0x50] sm:$0xff]
    %v650 = vld [vmem:[%s125 + $0x58] sm:$0xff]
    %v651 = vld [vmem:[%s125 + $0x60] sm:$0xff]
    %v652 = vld [vmem:[%s125 + $0x68] sm:$0xff]
    %v653 = vld [vmem:[%s125 + $0x70] sm:$0xff]
    %v654 = vld [vmem:[%s125 + $0x78] sm:$0xff]
    %655 = vset.pattern.permute.xlu0 1
    %656 = vperm.xlu0 %655, %v552
    %v657 = vpop.permute.xlu0 %656
    %659 = vset.pattern.permute.xlu0 1
    %660 = vperm.xlu0 %659, %v554
    %v661 = vpop.permute.xlu0 %660
    %663 = vset.pattern.permute.xlu0 1
    %664 = vperm.xlu0 %663, %v556
    %v665 = vpop.permute.xlu0 %664
    %667 = vset.pattern.permute.xlu0 1
    %668 = vperm.xlu0 %667, %v558
    %v669 = vpop.permute.xlu0 %668
    %671 = vset.pattern.permute.xlu0 1
    %672 = vperm.xlu0 %671, %v560
    %v673 = vpop.permute.xlu0 %672
    %675 = vset.pattern.permute.xlu0 1
    %676 = vperm.xlu0 %675, %v562
    %v677 = vpop.permute.xlu0 %676
    %679 = vset.pattern.permute.xlu0 1
    %680 = vperm.xlu0 %679, %v564
    %v681 = vpop.permute.xlu0 %680
    %683 = vset.pattern.permute.xlu0 1
    %684 = vperm.xlu0 %683, %v566
    %v685 = vpop.permute.xlu0 %684
    %v687 = vmul.f32 %v639, %v657
    %v688 = vmul.f32 %v640, %v657
    %v689 = vmul.f32 %v641, %v661
    %v690 = vmul.f32 %v642, %v661
    %v691 = vmul.f32 %v643, %v665
    %v692 = vmul.f32 %v644, %v665
    %v693 = vmul.f32 %v645, %v669
    %v694 = vmul.f32 %v646, %v669
    %v695 = vmul.f32 %v647, %v673
    %v696 = vmul.f32 %v648, %v673
    %v697 = vmul.f32 %v649, %v677
    %v698 = vmul.f32 %v650, %v677
    %v699 = vmul.f32 %v651, %v681
    %v700 = vmul.f32 %v652, %v681
    %v701 = vmul.f32 %v653, %v685
    %v702 = vmul.f32 %v654, %v685
    %s703 = scalar_lea.vmem [#allocation5], 128
    %704 = vst [vmem:[%s703] sm:$0xff] %v687
    %705 = vst [vmem:[%s703 + $0x8] sm:$0xff] %v688
    %706 = vst [vmem:[%s703 + $0x10] sm:$0xff] %v689
    %707 = vst [vmem:[%s703 + $0x18] sm:$0xff] %v690
    %708 = vst [vmem:[%s703 + $0x20] sm:$0xff] %v691
    %709 = vst [vmem:[%s703 + $0x28] sm:$0xff] %v692
    %710 = vst [vmem:[%s703 + $0x30] sm:$0xff] %v693
    %711 = vst [vmem:[%s703 + $0x38] sm:$0xff] %v694
    %712 = vst [vmem:[%s703 + $0x40] sm:$0xff] %v695
    %713 = vst [vmem:[%s703 + $0x48] sm:$0xff] %v696
    %714 = vst [vmem:[%s703 + $0x50] sm:$0xff] %v697
    %715 = vst [vmem:[%s703 + $0x58] sm:$0xff] %v698
    %716 = vst [vmem:[%s703 + $0x60] sm:$0xff] %v699
    %717 = vst [vmem:[%s703 + $0x68] sm:$0xff] %v700
    %718 = vst [vmem:[%s703 + $0x70] sm:$0xff] %v701
    %719 = vst [vmem:[%s703 + $0x78] sm:$0xff] %v702
    // Predicated region
    $region26: #{tpu_custom_call.1} parent=1 // pred_check
      _
    $region27: #{tpu_custom_call.1} parent=1 // pred_check_branch
      %721 = sbr.rel (0) target = $region29
    $region28: #{tpu_custom_call.1} parent=1 // pred_region
      %s723 = ssub.s32 4096, 4096
      %724 = vsyncadd [#allocation4], %s723
      %s725 = sshll.u32 [#allocation5], 4
      %s726 = int_to_ptr.vmem [resolvable:$true] %s725
      %731 = dma.vmem_to_hbm [thread:$0]  %s726, 4096, %s5, [#allocation4], 256, 256, 16
    $region29: #{tpu_custom_call.1} parent=1 // pred_fallthru
      _
    // Predicated region
    $region30: #{tpu_custom_call.1} parent=1 // pred_check
      _
    $region31: #{tpu_custom_call.1} parent=1 // pred_check_branch
      %733 = sbr.rel (0) target = $region33
    $region32: #{tpu_custom_call.1} parent=1 // pred_region
      %734 = dma.done [#allocation4], 4096
    $region33: #{tpu_custom_call.1} parent=1 // pred_fallthru
      _
    %735 = vsyncpa [#allocation3], 1
    %736 = vsyncpa [#allocation4], 1

</llo_original>
